<compile_context>
chip_gen: v5e
topology: v5e:2x2
jax: 0.10.0
libtpu: 0.0.40
codegen_flags: <defaults>
</compile_context>

<pallas_src>
import functools

import jax
import jax.numpy as jnp
from jax.experimental import pallas as pl
from jax.experimental.pallas import tpu as pltpu


def _mase_kernel(ins_ref, fc_ref, tgt_ref, mask_ref, out_ref, *,
                 freq, t_i, batch, batch_tile):
    """One batch tile -> per-row (un-normalized) MASE contributions (TB, 1)."""
    ins = ins_ref[...].astype(jnp.float32)                         # (TB, T_i)

    # Seasonal-naive denominator: sum_t |ins[t] - ins[t-freq]|, t in [freq, T_i).
    if t_i % 128 == 0:
        # Lane-aligned width: one XLU rotation + iota validity mask.
        lagged = pltpu.roll(ins, shift=freq, axis=1)
        lane = jax.lax.broadcasted_iota(jnp.int32, ins.shape, 1)
        naive = jnp.where(lane >= freq, jnp.abs(ins - lagged), 0.0)
    else:
        # Unaligned width: static value slices (one lane-shift relayout).
        naive = jnp.abs(ins[:, freq:] - ins[:, : t_i - freq])
    masep = jnp.sum(naive, axis=1, keepdims=True) / float(t_i - freq)  # (TB,1)

    # Rows past the true batch size (ragged last block) hold unspecified data.
    row = (pl.program_id(0) * batch_tile
           + jax.lax.broadcasted_iota(jnp.int32, masep.shape, 0))
    row_ok = row < batch

    # Guarded reciprocal replaces divide_no_nan's NaN/Inf scrub:
    # mask >= 0 and masep >= 0, so only masep == 0 / non-finite must zero out.
    inv = jnp.where(row_ok & (masep > 0.0), pl.reciprocal(masep), 0.0)

    mask = mask_ref[...].astype(jnp.float32)
    err = jnp.abs(tgt_ref[...].astype(jnp.float32)
                  - fc_ref[...].astype(jnp.float32))
    err_sum = jnp.sum(mask * err, axis=1, keepdims=True)            # (TB, 1)

    # `where` (not multiply) so NaNs from unspecified edge rows cannot propagate.
    out_ref[...] = jnp.where(row_ok, inv * err_sum, 0.0)


def _round_up(x, m):
    return pl.cdiv(x, m) * m


def mase_loss(insample, freq, forecast, target, mask, *, target_tile_bytes=2 << 20):
    """Pallas MASE loss. `freq` must be a static Python int."""
    freq = int(freq)
    b, t_i = insample.shape
    _, t_o = forecast.shape
    if not (0 < freq < t_i):
        raise ValueError("freq must satisfy 0 < freq < time_i")

    # VMEM footprint of one batch row (time axes pad to 128-lane tiles in VMEM).
    row_bytes = 4 * (_round_up(t_i, 128) + 3 * _round_up(t_o, 128))

    # Batch tiling: full-extent block for tiny batches, otherwise a multiple of
    # 8 sublanes sized to ~target_tile_bytes and never larger than the array.
    if b < 8:
        batch_tile = b
    else:
        batch_tile = (target_tile_bytes // row_bytes) // 8 * 8
        batch_tile = max(8, min(512, batch_tile))
        batch_tile = min(batch_tile, (b // 8) * 8)
    grid_b = pl.cdiv(b, batch_tile)
    # TODO(synk): also tile the time axis for extremely long series whose
    # row-block would overflow VMEM (not needed for typical MASE inputs).

    kernel = functools.partial(_mase_kernel, freq=freq, t_i=t_i,
                               batch=b, batch_tile=batch_tile)

    tile_bytes = batch_tile * row_bytes
    vmem_limit = int(min(32 << 20, max(16 << 20, 4 * tile_bytes)))

    cost = pl.CostEstimate(
        flops=int(b * (3 * t_i + 5 * t_o)),
        transcendentals=0,
        bytes_accessed=int(4 * (b * (t_i + 3 * t_o) + b)),
    )

    partials = pl.pallas_call(
        kernel,
        out_shape=jax.ShapeDtypeStruct((b, 1), jnp.float32),
        grid_spec=pltpu.PrefetchScalarGridSpec(
            num_scalar_prefetch=0,
            grid=(grid_b,),
            in_specs=[
                pl.BlockSpec((batch_tile, t_i), lambda i: (i, 0)),
                pl.BlockSpec((batch_tile, t_o), lambda i: (i, 0)),
                pl.BlockSpec((batch_tile, t_o), lambda i: (i, 0)),
                pl.BlockSpec((batch_tile, t_o), lambda i: (i, 0)),
            ],
            out_specs=pl.BlockSpec((batch_tile, 1), lambda i: (i, 0)),
        ),
        compiler_params=pltpu.CompilerParams(
            dimension_semantics=("parallel",),
            vmem_limit_bytes=vmem_limit,
        ),
        cost_estimate=cost,
    )(insample, forecast, target, mask)

    # Normalize by the TRUE element count of the final mean.
    return jnp.sum(partials) / (b * t_o)


def _mase_loss_ref(insample, freq, forecast, target, mask):
    """Pure-JAX reference matching the PyTorch semantics."""
    masep = jnp.mean(jnp.abs(insample[:, freq:] - insample[:, :-freq]), axis=1)
    quot = mask / masep[:, None]
    quot = jnp.where(jnp.isnan(quot) | (quot == jnp.inf), 0.0, quot)
    return jnp.mean(jnp.abs(target - forecast) * quot)


def _make_inputs(key, b, t_i, t_o):
    k1, k2, k3, k4 = jax.random.split(key, 4)
    insample = jax.random.normal(k1, (b, t_i), dtype=jnp.float32)
    # Make one row constant so masep == 0 there -> exercises divide_no_nan path.
    insample = insample.at[0, :].set(1.0)
    forecast = jax.random.normal(k2, (b, t_o), dtype=jnp.float32)
    target = jax.random.normal(k3, (b, t_o), dtype=jnp.float32)
    mask = (jax.random.uniform(k4, (b, t_o)) > 0.3).astype(jnp.float32)
    return insample, forecast, target, mask


if __name__ == "__main__":
    key = jax.random.PRNGKey(0)
    key1, key2 = jax.random.split(key)

    # Small, unaligned shapes (full-extent blocks, single grid step).
    B, T_I, T_O, FREQ = 4, 32, 16, 2
    ins, fc, tgt, msk = _make_inputs(key1, B, T_I, T_O)
    loss = jax.block_until_ready(mase_loss(ins, FREQ, fc, tgt, msk))
    ref = _mase_loss_ref(ins, FREQ, fc, tgt, msk)
    assert jnp.allclose(loss, ref, rtol=1e-5, atol=1e-5), (loss, ref)

    # Multi-tile batch with a ragged last block (exercises edge-row masking).
    B2, T_I2, T_O2, FREQ2 = 20, 96, 48, 3
    ins2, fc2, tgt2, msk2 = _make_inputs(key2, B2, T_I2, T_O2)
    loss2 = jax.block_until_ready(mase_loss(ins2, FREQ2, fc2, tgt2, msk2,
                                            target_tile_bytes=1 << 16))
    ref2 = _mase_loss_ref(ins2, FREQ2, fc2, tgt2, msk2)
    assert jnp.allclose(loss2, ref2, rtol=1e-5, atol=1e-5), (loss2, ref2)

    print("KERNEL_OK")
</pallas_src>

<mosaic_0001>
module attributes {stable_mosaic.version = 11 : i64} {
  func.func @_mase_kernel(%arg0: i32, %arg1: memref<4x32xf32, #tpu.memory_space<vmem>>, %arg2: memref<4x16xf32, #tpu.memory_space<vmem>>, %arg3: memref<4x16xf32, #tpu.memory_space<vmem>>, %arg4: memref<4x16xf32, #tpu.memory_space<vmem>>, %arg5: memref<4x1xf32, #tpu.memory_space<vmem>>) attributes {dimension_semantics = [#tpu.dimension_semantics<parallel>], iteration_bounds = array<i64: 1>, scalar_prefetch = 0 : i64, scratch_operands = 0 : i64, tpu.core_type = #tpu.core_type<tc>, window_params = [{transform_indices = @transform_0, window_bounds = array<i64: 4, 32>}, {transform_indices = @transform_1, window_bounds = array<i64: 4, 16>}, {transform_indices = @transform_2, window_bounds = array<i64: 4, 16>}, {transform_indices = @transform_3, window_bounds = array<i64: 4, 16>}, {transform_indices = @transform_4, window_bounds = array<i64: 4, 1>}]} {
    %c0 = arith.constant 0 : index
    %c0_0 = arith.constant 0 : index
    %0 = vector.load %arg1[%c0, %c0_0] : memref<4x32xf32, #tpu.memory_space<vmem>>, vector<4x32xf32>
    %1 = vector.extract_strided_slice %0 {offsets = [0, 2], sizes = [4, 30], strides = [1, 1]} : vector<4x32xf32> to vector<4x30xf32>
    %2 = vector.extract_strided_slice %0 {offsets = [0, 0], sizes = [4, 30], strides = [1, 1]} : vector<4x32xf32> to vector<4x30xf32>
    %3 = arith.subf %1, %2 : vector<4x30xf32>
    %4 = math.absf %3 : vector<4x30xf32>
    %cst = arith.constant dense<0.000000e+00> : vector<4xf32>
    %5 = vector.multi_reduction <add>, %4, %cst [1] : vector<4x30xf32> to vector<4xf32>
    %6 = vector.shape_cast %5 : vector<4xf32> to vector<4x1xf32>
    %cst_1 = arith.constant 3.000000e+01 : f32
    %7 = vector.broadcast %cst_1 : f32 to vector<4x1xf32>
    %8 = arith.divf %6, %7 : vector<4x1xf32>
    %c4_i32 = arith.constant 4 : i32
    %9 = arith.muli %arg0, %c4_i32 : i32
    %10 = tpu.iota {dimensions = array<i32: 0>} : vector<4x1xi32>
    %11 = vector.broadcast %9 : i32 to vector<4x1xi32>
    %12 = arith.addi %11, %10 : vector<4x1xi32>
    %c4_i32_2 = arith.constant 4 : i32
    %13 = vector.broadcast %c4_i32_2 : i32 to vector<4x1xi32>
    %14 = arith.cmpi slt, %12, %13 : vector<4x1xi32>
    %cst_3 = arith.constant 0.000000e+00 : f32
    %15 = vector.broadcast %cst_3 : f32 to vector<4x1xf32>
    %16 = arith.cmpf ogt, %8, %15 : vector<4x1xf32>
    %17 = arith.andi %14, %16 : vector<4x1xi1>
    %18 = tpu.reciprocal %8 : vector<4x1xf32> -> vector<4x1xf32>
    %cst_4 = arith.constant 0.000000e+00 : f32
    %19 = vector.broadcast %cst_4 : f32 to vector<4x1xf32>
    %20 = arith.select %17, %18, %19 : vector<4x1xi1>, vector<4x1xf32>
    %c0_5 = arith.constant 0 : index
    %c0_6 = arith.constant 0 : index
    %21 = vector.load %arg4[%c0_5, %c0_6] : memref<4x16xf32, #tpu.memory_space<vmem>>, vector<4x16xf32>
    %c0_7 = arith.constant 0 : index
    %c0_8 = arith.constant 0 : index
    %22 = vector.load %arg3[%c0_7, %c0_8] : memref<4x16xf32, #tpu.memory_space<vmem>>, vector<4x16xf32>
    %c0_9 = arith.constant 0 : index
    %c0_10 = arith.constant 0 : index
    %23 = vector.load %arg2[%c0_9, %c0_10] : memref<4x16xf32, #tpu.memory_space<vmem>>, vector<4x16xf32>
    %24 = arith.subf %22, %23 : vector<4x16xf32>
    %25 = math.absf %24 : vector<4x16xf32>
    %26 = arith.mulf %21, %25 : vector<4x16xf32>
    %cst_11 = arith.constant dense<0.000000e+00> : vector<4xf32>
    %27 = vector.multi_reduction <add>, %26, %cst_11 [1] : vector<4x16xf32> to vector<4xf32>
    %28 = vector.shape_cast %27 : vector<4xf32> to vector<4x1xf32>
    %29 = arith.mulf %20, %28 : vector<4x1xf32>
    %cst_12 = arith.constant 0.000000e+00 : f32
    %30 = vector.broadcast %cst_12 : f32 to vector<4x1xf32>
    %31 = arith.select %14, %29, %30 : vector<4x1xi1>, vector<4x1xf32>
    %c0_13 = arith.constant 0 : index
    %c0_14 = arith.constant 0 : index
    %32 = vector.load %arg5[%c0_13, %c0_14] : memref<4x1xf32, #tpu.memory_space<vmem>>, vector<4x1xf32>
    tpu.vector_store %arg5[%c0_13, %c0_14], %31 {strides = array<i32>} : memref<4x1xf32, #tpu.memory_space<vmem>>, vector<4x1xf32>,
    return
  }
  func.func @transform_0(%arg0: i32) -> (i32, i32) {
    %c0_i32 = arith.constant 0 : i32
    %c0_i32_0 = arith.constant 0 : i32
    return %arg0, %c0_i32 : i32, i32
  }
  func.func @transform_1(%arg0: i32) -> (i32, i32) {
    %c0_i32 = arith.constant 0 : i32
    %c0_i32_0 = arith.constant 0 : i32
    return %arg0, %c0_i32 : i32, i32
  }
  func.func @transform_2(%arg0: i32) -> (i32, i32) {
    %c0_i32 = arith.constant 0 : i32
    %c0_i32_0 = arith.constant 0 : i32
    return %arg0, %c0_i32 : i32, i32
  }
  func.func @transform_3(%arg0: i32) -> (i32, i32) {
    %c0_i32 = arith.constant 0 : i32
    %c0_i32_0 = arith.constant 0 : i32
    return %arg0, %c0_i32 : i32, i32
  }
  func.func @transform_4(%arg0: i32) -> (i32, i32) {
    %c0_i32 = arith.constant 0 : i32
    %c0_i32_0 = arith.constant 0 : i32
    return %arg0, %c0_i32 : i32, i32
  }
}

</mosaic_0001>

<llo_original>
// kernel: tpu_custom_call.1
$region0: #{tpu_custom_call.1}
  #allocation0 [shape = 'u32[]', space=smem, size = 0x4, offset = 0x4, fixed_abs, tag = 'smem constant byte address 0x4 - core index']
  #allocation1 [shape = 'u32[72,128]{1,0:T(1,128)}', space=vmem, size = 0x9000, scoped, tag = 'internal scratch']
  %s0 = inlined_call_operand.hbm [shape: f32[4,32], index: 0, kind: input, shape index: {}]
  %s1 = inlined_call_operand.hbm [shape: f32[4,16], index: 1, kind: input, shape index: {}]
  %s2 = inlined_call_operand.hbm [shape: f32[4,16], index: 2, kind: input, shape index: {}]
  %s3 = inlined_call_operand.hbm [shape: f32[4,16], index: 3, kind: input, shape index: {}]
  %s4 = inlined_call_operand.vmem [shape: f32[4,1], index: 4, kind: output, shape index: {}]
  %s5 = sld [smem:[#allocation0]]
  $region42: #{tpu_custom_call.1} parent=0
    _
  %s7 = ssub.s32 1, %s5
  %s8 = scalar_select 0, %s7, %s5
  $region1: #{tpu_custom_call.1} parent=0
    #allocation2 [shape = 'u8[2048]{0}', space=vmem, size = 0x800, scoped, tag = 'input window, operand 0, single buffered']
    #allocation3 [shape = 's32[1]{0}', space=sflag, size = 0x4, scoped, tag = 'scoped memory for tpu_custom_call.1']
    #allocation4 [shape = 'u8[2048]{0}', space=vmem, size = 0x800, scoped, tag = 'input window, operand 1, single buffered']
    #allocation5 [shape = 's32[1]{0}', space=sflag, size = 0x4, scoped, tag = 'scoped memory for tpu_custom_call.1']
    #allocation6 [shape = 'u8[2048]{0}', space=vmem, size = 0x800, scoped, tag = 'input window, operand 2, single buffered']
    #allocation7 [shape = 'u8[2048]{0}', space=vmem, size = 0x800, scoped, tag = 'input window, operand 3, single buffered']
    #allocation8 [shape = 's32[1]{0}', space=sflag, size = 0x4, scoped, tag = 'scoped memory for tpu_custom_call.1']
    %9 = vsyncpa [#allocation3], 0
    %10 = vsyncpa [#allocation5], 0
    %11 = vsyncpa [#allocation8], 0
    // Predicated region
    $region2: #{tpu_custom_call.1} parent=1 // pred_check
      _
    $region3: #{tpu_custom_call.1} parent=1 // pred_check_branch
      %13 = sbr.rel (0) target = $region5
    $region4: #{tpu_custom_call.1} parent=1 // pred_region
      %15 = vsyncadd [#allocation3], 0
      %s17 = sshll.u32 %s0, 4
      %s18 = int_to_ptr.hbm [resolvable:$true] %s17
      %s19 = sshll.u32 [#allocation2], 4
      %s20 = int_to_ptr.vmem [resolvable:$true] %s19
      %22 = dma.hbm_to_vmem [thread:$0]  %s18, 64, %s20, [#allocation3]
    $region5: #{tpu_custom_call.1} parent=1 // pred_fallthru
      _
    // Predicated region
    $region6: #{tpu_custom_call.1} parent=1 // pred_check
      _
    $region7: #{tpu_custom_call.1} parent=1 // pred_check_branch
      %24 = sbr.rel (0) target = $region9
    $region8: #{tpu_custom_call.1} parent=1 // pred_region
      %26 = vsyncadd [#allocation5], 0
      %s28 = sshll.u32 %s1, 4
      %s29 = int_to_ptr.hbm [resolvable:$true] %s28
      %s30 = sshll.u32 [#allocation4], 4
      %s31 = int_to_ptr.vmem [resolvable:$true] %s30
      %33 = dma.hbm_to_vmem [thread:$0]  %s29, 64, %s31, [#allocation5]
    $region9: #{tpu_custom_call.1} parent=1 // pred_fallthru
      _
    // Predicated region
    $region10: #{tpu_custom_call.1} parent=1 // pred_check
      _
    $region11: #{tpu_custom_call.1} parent=1 // pred_check_branch
      %35 = sbr.rel (0) target = $region13
    $region12: #{tpu_custom_call.1} parent=1 // pred_region
      %37 = vsyncadd [#allocation5], 0
      %s39 = sshll.u32 %s2, 4
      %s40 = int_to_ptr.hbm [resolvable:$true] %s39
      %s41 = sshll.u32 [#allocation6], 4
      %s42 = int_to_ptr.vmem [resolvable:$true] %s41
      %44 = dma.hbm_to_vmem [thread:$0]  %s40, 64, %s42, [#allocation5]
    $region13: #{tpu_custom_call.1} parent=1 // pred_fallthru
      _
    // Predicated region
    $region14: #{tpu_custom_call.1} parent=1 // pred_check
      _
    $region15: #{tpu_custom_call.1} parent=1 // pred_check_branch
      %46 = sbr.rel (0) target = $region17
    $region16: #{tpu_custom_call.1} parent=1 // pred_region
      %48 = vsyncadd [#allocation8], 0
      %s50 = sshll.u32 %s3, 4
      %s51 = int_to_ptr.hbm [resolvable:$true] %s50
      %s52 = sshll.u32 [#allocation7], 4
      %s53 = int_to_ptr.vmem [resolvable:$true] %s52
      %55 = dma.hbm_to_vmem [thread:$0]  %s51, 64, %s53, [#allocation8]
    $region17: #{tpu_custom_call.1} parent=1 // pred_fallthru
      _
    // Predicated region
    $region18: #{tpu_custom_call.1} parent=1 // pred_check
      _
    $region19: #{tpu_custom_call.1} parent=1 // pred_check_branch
      %57 = sbr.rel (0) target = $region21
    $region20: #{tpu_custom_call.1} parent=1 // pred_region
      %59 = dma.done [#allocation3], 64
    $region21: #{tpu_custom_call.1} parent=1 // pred_fallthru
      _
    // Predicated region
    $region22: #{tpu_custom_call.1} parent=1 // pred_check
      _
    $region23: #{tpu_custom_call.1} parent=1 // pred_check_branch
      %61 = sbr.rel (0) target = $region25
    $region24: #{tpu_custom_call.1} parent=1 // pred_region
      %63 = dma.done [#allocation5], 64
    $region25: #{tpu_custom_call.1} parent=1 // pred_fallthru
      _
    // Predicated region
    $region26: #{tpu_custom_call.1} parent=1 // pred_check
      _
    $region27: #{tpu_custom_call.1} parent=1 // pred_check_branch
      %65 = sbr.rel (0) target = $region29
    $region28: #{tpu_custom_call.1} parent=1 // pred_region
      %67 = dma.done [#allocation5], 64
    $region29: #{tpu_custom_call.1} parent=1 // pred_fallthru
      _
    // Predicated region
    $region30: #{tpu_custom_call.1} parent=1 // pred_check
      _
    $region31: #{tpu_custom_call.1} parent=1 // pred_check_branch
      %69 = sbr.rel (0) target = $region33
    $region32: #{tpu_custom_call.1} parent=1 // pred_region
      %71 = dma.done [#allocation8], 64
    $region33: #{tpu_custom_call.1} parent=1 // pred_fallthru
      _
    %v72 = vld [vmem:[#allocation2] sm:$0xf]
    %74 = vrot.lane.b32.xlu0 %v72, 2
    %v75 = vpop.permute.xlu0 %74
    %v77 = vsub.f32 %v72, %v75
    %v78 = vand.u32 2147483647, %v77
    %80 = vrot.lane.b32.xlu0 %v78, 126
    %v81 = vpop.permute.xlu0 %80
    %vm83 = vcmask 240640
    %v84 = vsel %vm83, %v81, 0.0
    %85 = vadd.xlane.f32.xlu0 %v84
    %v86 = vpop.xlane.xlu0 %85
    %v87 = vrcp.pop 30.0
    %v88 = vmul.f32 30.0, %v87
    %v89 = vsub.f32 1.0, %v88
    %v90 = vmul.f32 %v87, %v89
    %v91 = vadd.f32 %v87, %v90
    %vm92 = vweird.f32 %v87
    %v93 = vsel %vm92, %v87, %v91
    %v94 = vmul.f32 %v86, %v93
    %s95 = smul.u32 0, 4
    %v96 = vlaneseq
    %v97 = vshrl.u32 %v96, 7
    %v98 = vstv %s95
    %v99 = vadd.s32 %v98, %v97
    %vm100 = vcmp.lt.s32.totalorder %v99, 4
    %vm101 = vcmp.gt.f32.partialorder %v94, 0.0
    %vm102 = vmand %vm100, %vm101
    %v103 = vrcp.pop %v94
    %v104 = vmul.f32 %v94, %v103
    %v105 = vsub.f32 1.0, %v104
    %v106 = vmul.f32 %v103, %v105
    %v107 = vadd.f32 %v103, %v106
    %vm108 = vweird.f32 %v94
    %vm109 = vweird.f32 %v103
    %vm110 = vmor %vm108, %vm109
    %v111 = vsel %vm110, %v103, %v107
    %v112 = vand.u32 2147483647, %v94
    %vm113 = vcmp.eq.f32.partialorder %v112, 8.507059e+37
    %v114 = vand.u32 %v94, 2147483648
    %v115 = vor.u32 1.1754944e-38, %v114
    %v116 = vsel %vm113, %v115, %v111
    %v117 = vsel %vm102, %v116, 0.0
    %v118 = vld [vmem:[#allocation7] sm:$0xf]
    %v119 = vld [vmem:[#allocation6] sm:$0xf]
    %v120 = vld [vmem:[#allocation4] sm:$0xf]
    %v121 = vsub.f32 %v119, %v120
    %v122 = vand.u32 2147483647, %v121
    %v123 = vmul.f32 %v118, %v122
    %vm124 = vcmask 125952
    %v125 = vsel %vm124, %v123, 0.0
    %126 = vadd.xlane.f32.xlu0 %v125
    %v127 = vpop.xlane.xlu0 %126
    %v128 = vmul.f32 %v117, %v127
    %v129 = vsel %vm100, %v128, 0.0
    %vm130 = vcmask 3072
    %131 = vst.msk [vmem:[%s4] sm:$0xf] %vm130, %v129
    // Predicated region
    $region34: #{tpu_custom_call.1} parent=1 // pred_check
      _
    $region35: #{tpu_custom_call.1} parent=1 // pred_check_branch
      %133 = sbr.rel (0) target = $region37
    $region36: #{tpu_custom_call.1} parent=1 // pred_region
      _
    $region37: #{tpu_custom_call.1} parent=1 // pred_fallthru
      _
    // Predicated region
    $region38: #{tpu_custom_call.1} parent=1 // pred_check
      _
    $region39: #{tpu_custom_call.1} parent=1 // pred_check_branch
      %135 = sbr.rel (0) target = $region41
    $region40: #{tpu_custom_call.1} parent=1 // pred_region
      _
    $region41: #{tpu_custom_call.1} parent=1 // pred_fallthru
      _
    %136 = vsyncpa [#allocation3], 1
    %137 = vsyncpa [#allocation5], 1
    %138 = vsyncpa [#allocation8], 1

</llo_original>
